<compile_context>
chip_gen: v5e
topology: v5e:2x2
jax: 0.10.0
libtpu: 0.0.40
codegen_flags: <defaults>
</compile_context>

<pallas_src>
import jax
import jax.numpy as jnp
from jax.experimental import pallas as pl
from jax.experimental.pallas import tpu as pltpu


def _zencoder_kernel(x_ref, w_ref, b_ref, mean_ref, var_ref):
    # One fused MXU matmul covers both heads; f32 accumulation; single bias
    # add. The accumulator is split at a 128-lane boundary (no relayout) and
    # stored as two lane-dense outputs.
    zp = mean_ref.shape[-1]
    acc = (
        jnp.dot(x_ref[...], w_ref[...], preferred_element_type=jnp.float32)
        + b_ref[...]
    )
    mean_ref[...] = acc[:, :zp].astype(mean_ref.dtype)
    var_ref[...] = acc[:, zp:].astype(var_ref.dtype)


def np_init_zencoder(x, w_m, b_m, w_v, b_v, *, block_b=4096,
                     min_pallas_batch=1024, force_pallas=False,
                     vmem_budget_bytes=32 * 1024 * 1024):
    """x: (B, r_dim); w_*: (r_dim, z_dim) (already W^T of torch's (out, in));
    b_*: (z_dim,). Returns (mean, var_temp), each (B, z_dim)."""
    B, r_dim = x.shape
    z_dim = w_m.shape[1]

    # ---- Small-problem fast path --------------------------------------
    # At tiny B the custom-call launch, lane/batch padding and extra HBM
    # round trips dwarf the few KFLOP of math; let XLA fuse the dots.
    if not force_pallas and B < min_pallas_batch:
        return x @ w_m + b_m, x @ w_v + b_v

    itemsize = jnp.dtype(x.dtype).itemsize
    sub = 16 if itemsize < 4 else 8          # sublane multiple (bf16 packs 16)

    # ---- Fuse heads, each padded to its own lane-dense (128k) slab -----
    zp = pl.cdiv(z_dim, 128) * 128           # per-head padded width
    n_pad = 2 * zp
    zpad = zp - z_dim
    w = jnp.concatenate(
        [jnp.pad(w_m, ((0, 0), (0, zpad))),
         jnp.pad(w_v, ((0, 0), (0, zpad)))], axis=1)         # (r_dim, 2*zp)
    b = jnp.concatenate(
        [jnp.pad(b_m, (0, zpad)),
         jnp.pad(b_v, (0, zpad))]).reshape(1, n_pad)         # (1, 2*zp)

    # ---- Batch tile: largest that fits the VMEM budget ------------------
    # x and the two outputs are double-buffered by the pipeline; the fused
    # weight/bias are single-buffered (pl.Buffered(1), constant index_map).
    fixed_bytes = (r_dim * n_pad + n_pad) * itemsize
    per_row_bytes = 2 * (r_dim + n_pad) * itemsize
    tm_cap = max(sub, (vmem_budget_bytes - fixed_bytes) // per_row_bytes)
    tm = min(block_b, int(tm_cap))
    tm = max(sub, (tm // sub) * sub)          # enforce sublane multiple
    if B <= tm:
        tm = max(sub, pl.cdiv(B, sub) * sub)  # single-tile case
    b_pad = pl.cdiv(B, tm) * tm
    x_in = x if b_pad == B else jnp.pad(x, ((0, b_pad - B), (0, 0)))
    grid = (b_pad // tm,)

    need = 2 * tm * (r_dim + n_pad) * itemsize + fixed_bytes
    vmem_limit = int(min(64 * 1024 * 1024,
                         max(2 * need, 16 * 1024 * 1024)))

    cost = pl.CostEstimate(
        flops=2 * b_pad * r_dim * n_pad,
        transcendentals=0,
        bytes_accessed=(b_pad * r_dim + r_dim * n_pad + n_pad
                        + b_pad * n_pad) * itemsize,
    )

    mean_p, var_p = pl.pallas_call(
        _zencoder_kernel,
        out_shape=(
            jax.ShapeDtypeStruct((b_pad, zp), x.dtype),
            jax.ShapeDtypeStruct((b_pad, zp), x.dtype),
        ),
        grid=grid,
        in_specs=[
            # streamed batch tile of x
            pl.BlockSpec((tm, r_dim), lambda i: (i, 0)),
            # resident fused weight / bias, single-buffered
            pl.BlockSpec((r_dim, n_pad), lambda i: (0, 0),
                         pipeline_mode=pl.Buffered(1)),
            pl.BlockSpec((1, n_pad), lambda i: (0, 0),
                         pipeline_mode=pl.Buffered(1)),
        ],
        out_specs=[
            pl.BlockSpec((tm, zp), lambda i: (i, 0)),
            pl.BlockSpec((tm, zp), lambda i: (i, 0)),
        ],
        compiler_params=pltpu.CompilerParams(
            dimension_semantics=("parallel",),   # batch axis is independent
            vmem_limit_bytes=vmem_limit,
        ),
        cost_estimate=cost,
    )(x_in, w, b)

    # Offset-0 narrowing slices only (identity when z_dim % 128 == 0 and
    # B % tm == 0) — no lane-shift relayout in the wrapper.
    mean = mean_p[:B, :z_dim]
    var_temp = var_p[:B, :z_dim]
    return mean, var_temp


def init_params(key, r_dim, z_dim, dtype=jnp.float32):
    """Deterministic init mimicking torch.nn.Linear's U(-1/sqrt(in), 1/sqrt(in))."""
    k1, k2, k3, k4 = jax.random.split(key, 4)
    bound = 1.0 / jnp.sqrt(jnp.float32(r_dim))
    # Stored as (r_dim, z_dim) == W^T of PyTorch's (out, in) weight.
    w_m = jax.random.uniform(k1, (r_dim, z_dim), dtype, -bound, bound)
    b_m = jax.random.uniform(k2, (z_dim,), dtype, -bound, bound)
    w_v = jax.random.uniform(k3, (r_dim, z_dim), dtype, -bound, bound)
    b_v = jax.random.uniform(k4, (z_dim,), dtype, -bound, bound)
    return w_m, b_m, w_v, b_v


if __name__ == "__main__":
    # Small shapes consistent with the module: batch=8, r_dim=32, z_dim=32.
    B, r_dim, z_dim = 8, 32, 32
    key = jax.random.PRNGKey(0)
    kx, kp = jax.random.split(key)
    x = jax.random.normal(kx, (B, r_dim), jnp.float32)
    w_m, b_m, w_v, b_v = init_params(kp, r_dim, z_dim)

    ref_mean = x @ w_m + b_m
    ref_var = x @ w_v + b_v

    # 1) Default path at the tiny module shape -> XLA fast path.
    mean, var_temp = np_init_zencoder(x, w_m, b_m, w_v, b_v)
    jax.block_until_ready((mean, var_temp))
    assert mean.shape == (B, z_dim) and var_temp.shape == (B, z_dim)
    assert jnp.allclose(mean, ref_mean, atol=1e-5, rtol=1e-5)
    assert jnp.allclose(var_temp, ref_var, atol=1e-5, rtol=1e-5)

    # 2) Force the Pallas kernel at the same small shape
    #    (single-tile grid, lane padding, batch already sublane-aligned).
    mean_p, var_p = np_init_zencoder(x, w_m, b_m, w_v, b_v, force_pallas=True)
    jax.block_until_ready((mean_p, var_p))
    assert mean_p.shape == (B, z_dim) and var_p.shape == (B, z_dim)
    assert jnp.allclose(mean_p, ref_mean, atol=1e-5, rtol=1e-5)
    assert jnp.allclose(var_p, ref_var, atol=1e-5, rtol=1e-5)

    # 3) Multi-tile grid path (B > tile, batch not a multiple of the tile).
    Bbig = 4100
    xb = jax.random.normal(jax.random.PRNGKey(1), (Bbig, r_dim), jnp.float32)
    mb, vb = np_init_zencoder(xb, w_m, b_m, w_v, b_v, block_b=2048)
    jax.block_until_ready((mb, vb))
    assert jnp.allclose(mb, xb @ w_m + b_m, atol=1e-4, rtol=1e-4)
    assert jnp.allclose(vb, xb @ w_v + b_v, atol=1e-4, rtol=1e-4)

    print("KERNEL_OK")
</pallas_src>

<mosaic_0001>
module attributes {stable_mosaic.version = 11 : i64} {
  func.func @_zencoder_kernel(%arg0: i32, %arg1: memref<8x32xf32, #tpu.memory_space<vmem>>, %arg2: memref<32x256xf32, #tpu.memory_space<vmem>>, %arg3: memref<1x256xf32, #tpu.memory_space<vmem>>, %arg4: memref<8x128xf32, #tpu.memory_space<vmem>>, %arg5: memref<8x128xf32, #tpu.memory_space<vmem>>) attributes {dimension_semantics = [#tpu.dimension_semantics<parallel>], iteration_bounds = array<i64: 1>, scalar_prefetch = 0 : i64, scratch_operands = 0 : i64, tpu.core_type = #tpu.core_type<tc>, window_params = [{transform_indices = @transform_0, window_bounds = array<i64: 8, 32>}, {pipeline_mode = #tpu.pipeline_mode<synchronous>, transform_indices = @transform_1, window_bounds = array<i64: 32, 256>}, {pipeline_mode = #tpu.pipeline_mode<synchronous>, transform_indices = @transform_2, window_bounds = array<i64: 1, 256>}, {transform_indices = @transform_3, window_bounds = array<i64: 8, 128>}, {transform_indices = @transform_4, window_bounds = array<i64: 8, 128>}]} {
    %c0 = arith.constant 0 : index
    %c0_0 = arith.constant 0 : index
    %0 = vector.load %arg1[%c0, %c0_0] : memref<8x32xf32, #tpu.memory_space<vmem>>, vector<8x32xf32>
    %c0_1 = arith.constant 0 : index
    %c0_2 = arith.constant 0 : index
    %1 = vector.load %arg2[%c0_1, %c0_2] : memref<32x256xf32, #tpu.memory_space<vmem>>, vector<32x256xf32>
    %cst = arith.constant dense<0.000000e+00> : vector<8x256xf32>
    %2 = tpu.matmul %0, %1, %cst {dimension_numbers = #tpu.dot_dimension_numbers<[1], [0], [0], [1], [0, 0, 1, 1], [], []>} : vector<8x32xf32>, vector<32x256xf32>, vector<8x256xf32> -> vector<8x256xf32>
    %c0_3 = arith.constant 0 : index
    %c0_4 = arith.constant 0 : index
    %3 = vector.load %arg3[%c0_3, %c0_4] : memref<1x256xf32, #tpu.memory_space<vmem>>, vector<1x256xf32>
    %4 = vector.broadcast %3 : vector<1x256xf32> to vector<8x256xf32>
    %5 = arith.addf %2, %4 : vector<8x256xf32>
    %6 = vector.extract_strided_slice %5 {offsets = [0, 0], sizes = [8, 128], strides = [1, 1]} : vector<8x256xf32> to vector<8x128xf32>
    %c0_5 = arith.constant 0 : index
    %c0_6 = arith.constant 0 : index
    %7 = vector.load %arg4[%c0_5, %c0_6] : memref<8x128xf32, #tpu.memory_space<vmem>>, vector<8x128xf32>
    tpu.vector_store %arg4[%c0_5, %c0_6], %6 {strides = array<i32>} : memref<8x128xf32, #tpu.memory_space<vmem>>, vector<8x128xf32>,
    %8 = vector.extract_strided_slice %5 {offsets = [0, 128], sizes = [8, 128], strides = [1, 1]} : vector<8x256xf32> to vector<8x128xf32>
    %c0_7 = arith.constant 0 : index
    %c0_8 = arith.constant 0 : index
    %9 = vector.load %arg5[%c0_7, %c0_8] : memref<8x128xf32, #tpu.memory_space<vmem>>, vector<8x128xf32>
    tpu.vector_store %arg5[%c0_7, %c0_8], %8 {strides = array<i32>} : memref<8x128xf32, #tpu.memory_space<vmem>>, vector<8x128xf32>,
    return
  }
  func.func @transform_0(%arg0: i32) -> (i32, i32) {
    %c0_i32 = arith.constant 0 : i32
    %c0_i32_0 = arith.constant 0 : i32
    return %arg0, %c0_i32 : i32, i32
  }
  func.func @transform_1(%arg0: i32) -> (i32, i32) {
    %c0_i32 = arith.constant 0 : i32
    %c0_i32_0 = arith.constant 0 : i32
    %c0_i32_1 = arith.constant 0 : i32
    return %c0_i32, %c0_i32_0 : i32, i32
  }
  func.func @transform_2(%arg0: i32) -> (i32, i32) {
    %c0_i32 = arith.constant 0 : i32
    %c0_i32_0 = arith.constant 0 : i32
    %c0_i32_1 = arith.constant 0 : i32
    return %c0_i32, %c0_i32_0 : i32, i32
  }
  func.func @transform_3(%arg0: i32) -> (i32, i32) {
    %c0_i32 = arith.constant 0 : i32
    %c0_i32_0 = arith.constant 0 : i32
    return %arg0, %c0_i32 : i32, i32
  }
  func.func @transform_4(%arg0: i32) -> (i32, i32) {
    %c0_i32 = arith.constant 0 : i32
    %c0_i32_0 = arith.constant 0 : i32
    return %arg0, %c0_i32 : i32, i32
  }
}

</mosaic_0001>

<llo_original>
// kernel: tpu_custom_call.1
$region0: #{tpu_custom_call.1}
  #allocation0 [shape = 'u32[]', space=smem, size = 0x4, offset = 0x4, fixed_abs, tag = 'smem constant byte address 0x4 - core index']
  #allocation1 [shape = 'u32[72,128]{1,0:T(1,128)}', space=vmem, size = 0x9000, scoped, tag = 'internal scratch']
  %s0 = inlined_call_operand.hbm [shape: f32[8,32], index: 0, kind: input, shape index: {}]
  %s1 = inlined_call_operand.hbm [shape: f32[32,256], index: 1, kind: input, shape index: {}]
  %s2 = inlined_call_operand.hbm [shape: f32[1,256], index: 2, kind: input, shape index: {}]
  %s3 = inlined_call_operand.hbm [shape: f32[8,128], index: 3, kind: output, shape index: {0}]
  %s4 = inlined_call_operand.hbm [shape: f32[8,128], index: 4, kind: output, shape index: {1}]
  %5 = xla_tuple %s3, %s4
  %s6 = sld [smem:[#allocation0]]
  $region42: #{tpu_custom_call.1} parent=0
    _
  %s8 = ssub.s32 1, %s6
  %s9 = scalar_select 0, %s8, %s6
  $region1: #{tpu_custom_call.1} parent=0
    #allocation2 [shape = 'u8[4096]{0}', space=vmem, size = 0x1000, scoped, tag = 'input window, operand 0, single buffered']
    #allocation3 [shape = 's32[1]{0}', space=sflag, size = 0x4, scoped, tag = 'scoped memory for tpu_custom_call.1']
    #allocation4 [shape = 's32[1]{0}', space=sflag, size = 0x4, scoped, tag = 'scoped memory for tpu_custom_call.1']
    #allocation5 [shape = 'u8[32768]{0}', space=vmem, size = 0x8000, scoped, tag = 'input window, operand 1, single buffered']
    #allocation6 [shape = 's32[1]{0}', space=sflag, size = 0x4, scoped, tag = 'scoped memory for tpu_custom_call.1']
    #allocation7 [shape = 'u8[1024]{0}', space=vmem, size = 0x400, scoped, tag = 'input window, operand 2, single buffered']
    #allocation8 [shape = 'u8[4096]{0}', space=vmem, size = 0x1000, scoped, tag = 'output window, operand 0, single buffered']
    #allocation9 [shape = 'u8[4096]{0}', space=vmem, size = 0x1000, scoped, tag = 'output window, operand 1, single buffered']
    #allocation10 [shape = 's32[1]{0}', space=sflag, size = 0x4, scoped, tag = 'scoped memory for tpu_custom_call.1']
    %10 = vsyncpa [#allocation3], 0
    %11 = vsyncpa [#allocation6], 0
    %12 = vsyncpa [#allocation4], 0
    %13 = vsyncpa [#allocation10], 0
    // Predicated region
    $region2: #{tpu_custom_call.1} parent=1 // pred_check
      _
    $region3: #{tpu_custom_call.1} parent=1 // pred_check_branch
      %15 = sbr.rel (0) target = $region5
    $region4: #{tpu_custom_call.1} parent=1 // pred_region
      %17 = vsyncadd [#allocation3], 0
      %s19 = sshll.u32 %s0, 4
      %s20 = int_to_ptr.hbm [resolvable:$true] %s19
      %s21 = sshll.u32 [#allocation2], 4
      %s22 = int_to_ptr.vmem [resolvable:$true] %s21
      %24 = dma.hbm_to_vmem [thread:$0]  %s20, 128, %s22, [#allocation3]
    $region5: #{tpu_custom_call.1} parent=1 // pred_fallthru
      _
    // Predicated region
    $region6: #{tpu_custom_call.1} parent=1 // pred_check
      _
    $region7: #{tpu_custom_call.1} parent=1 // pred_check_branch
      %26 = sbr.rel (0) target = $region9
    $region8: #{tpu_custom_call.1} parent=1 // pred_region
      %28 = vsyncadd [#allocation6], 0
      %s29 = sshll.u32 %s1, 4
      %s30 = int_to_ptr.hbm [resolvable:$true] %s29
      %s31 = sshll.u32 [#allocation5], 4
      %s32 = int_to_ptr.vmem [resolvable:$true] %s31
      %37 = dma.hbm_to_vmem [thread:$0]  %s30, 1024, %s32, [#allocation6], 256, 256, 16
    $region9: #{tpu_custom_call.1} parent=1 // pred_fallthru
      _
    // Predicated region
    $region10: #{tpu_custom_call.1} parent=1 // pred_check
      _
    $region11: #{tpu_custom_call.1} parent=1 // pred_check_branch
      %39 = sbr.rel (0) target = $region13
    $region12: #{tpu_custom_call.1} parent=1 // pred_region
      %41 = vsyncadd [#allocation6], 0
      %s43 = sshll.u32 %s2, 4
      %s44 = int_to_ptr.hbm [resolvable:$true] %s43
      %s45 = sshll.u32 [#allocation7], 4
      %s46 = int_to_ptr.vmem [resolvable:$true] %s45
      %48 = dma.hbm_to_vmem [thread:$0]  %s44, 32, %s46, [#allocation6]
    $region13: #{tpu_custom_call.1} parent=1 // pred_fallthru
      _
    // Predicated region
    $region14: #{tpu_custom_call.1} parent=1 // pred_check
      _
    $region15: #{tpu_custom_call.1} parent=1 // pred_check_branch
      %50 = sbr.rel (0) target = $region17
    $region16: #{tpu_custom_call.1} parent=1 // pred_region
      %52 = dma.done [#allocation3], 128
    $region17: #{tpu_custom_call.1} parent=1 // pred_fallthru
      _
    // Predicated region
    $region18: #{tpu_custom_call.1} parent=1 // pred_check
      _
    $region19: #{tpu_custom_call.1} parent=1 // pred_check_branch
      %54 = sbr.rel (0) target = $region21
    $region20: #{tpu_custom_call.1} parent=1 // pred_region
      %56 = dma.done [#allocation6], 1024
    $region21: #{tpu_custom_call.1} parent=1 // pred_fallthru
      _
    // Predicated region
    $region22: #{tpu_custom_call.1} parent=1 // pred_check
      _
    $region23: #{tpu_custom_call.1} parent=1 // pred_check_branch
      %58 = sbr.rel (0) target = $region25
    $region24: #{tpu_custom_call.1} parent=1 // pred_region
      %60 = dma.done [#allocation6], 32
    $region25: #{tpu_custom_call.1} parent=1 // pred_fallthru
      _
    %v61 = vld [vmem:[#allocation2] sm:$0xff]
    %v62 = vld [vmem:[#allocation5] sm:$0xff]
    %v63 = vld [vmem:[#allocation5 + $0x8] sm:$0xff]
    %v64 = vld [vmem:[#allocation5 + $0x10] sm:$0xff]
    %v65 = vld [vmem:[#allocation5 + $0x18] sm:$0xff]
    %v66 = vld [vmem:[#allocation5 + $0x20] sm:$0xff]
    %v67 = vld [vmem:[#allocation5 + $0x28] sm:$0xff]
    %v68 = vld [vmem:[#allocation5 + $0x30] sm:$0xff]
    %v69 = vld [vmem:[#allocation5 + $0x38] sm:$0xff]
    %v70 = vld [vmem:[#allocation7] sm:$0x3]
    %v72 = vperm.slane %v70, 0
    %v73 = vperm.slane %v70, 1
    %vm76 = vcmask 261120
    %v78 = vsel %vm76, %v61, 0
    %80 = vmatpush.msra.mxu0 0.0
    %81 = vmatpush.msra.mxu0 0.0
    %82 = vmatpush.msra.mxu0 0.0
    %83 = vmatpush.msra.mxu0 0.0
    %84 = vmatpush.msra.mxu0 0.0
    %85 = vmatpush.msra.mxu0 0.0
    %86 = vmatpush.msra.mxu0 0.0
    %87 = vmatpush.msra.mxu0 0.0
    %88 = vmatpush.msra.mxu0 0.0
    %89 = vmatpush.msra.mxu0 0.0
    %90 = vmatpush.msra.mxu0 0.0
    %91 = vmatpush.msra.mxu0 0.0
    %92 = vmatpush.msra.mxu0 %v68
    %93 = vmatpush.msra.mxu0 %v66
    %94 = vmatpush.msra.mxu0 %v64
    %95 = vmatpush.msra.mxu0 %v62
    %96 = vmatmul.f32.gmra.mxu0 %v78
    %v97 = vpop.f32.mrf.mxu0
    %v98 = vadd.f32 %v72, %v97
    %99 = vdwg.mxu0
    %100 = vmatpush.msra.mxu0 0.0
    %101 = vmatpush.msra.mxu0 0.0
    %102 = vmatpush.msra.mxu0 0.0
    %103 = vmatpush.msra.mxu0 0.0
    %104 = vmatpush.msra.mxu0 0.0
    %105 = vmatpush.msra.mxu0 0.0
    %106 = vmatpush.msra.mxu0 0.0
    %107 = vmatpush.msra.mxu0 0.0
    %108 = vmatpush.msra.mxu0 0.0
    %109 = vmatpush.msra.mxu0 0.0
    %110 = vmatpush.msra.mxu0 0.0
    %111 = vmatpush.msra.mxu0 0.0
    %112 = vmatpush.msra.mxu0 %v69
    %113 = vmatpush.msra.mxu0 %v67
    %114 = vmatpush.msra.mxu0 %v65
    %115 = vmatpush.msra.mxu0 %v63
    %116 = vmatmul.f32.gmra.mxu0 %v78
    %v117 = vpop.f32.mrf.mxu0
    %v118 = vadd.f32 %v73, %v117
    %119 = vdwg.mxu0
    %120 = vst [vmem:[#allocation8] sm:$0xff] %v98
    %121 = vst [vmem:[#allocation9] sm:$0xff] %v118
    // Predicated region
    $region26: #{tpu_custom_call.1} parent=1 // pred_check
      _
    $region27: #{tpu_custom_call.1} parent=1 // pred_check_branch
      %123 = sbr.rel (0) target = $region29
    $region28: #{tpu_custom_call.1} parent=1 // pred_region
      %125 = vsyncadd [#allocation4], 0
      %s127 = sshll.u32 [#allocation8], 4
      %s128 = int_to_ptr.vmem [resolvable:$true] %s127
      %s129 = sshll.u32 %s3, 4
      %s130 = int_to_ptr.hbm [resolvable:$true] %s129
      %132 = dma.vmem_to_hbm [thread:$0]  %s128, 128, %s130, [#allocation4]
    $region29: #{tpu_custom_call.1} parent=1 // pred_fallthru
      _
    // Predicated region
    $region30: #{tpu_custom_call.1} parent=1 // pred_check
      _
    $region31: #{tpu_custom_call.1} parent=1 // pred_check_branch
      %134 = sbr.rel (0) target = $region33
    $region32: #{tpu_custom_call.1} parent=1 // pred_region
      %136 = vsyncadd [#allocation10], 0
      %s138 = sshll.u32 [#allocation9], 4
      %s139 = int_to_ptr.vmem [resolvable:$true] %s138
      %s140 = sshll.u32 %s4, 4
      %s141 = int_to_ptr.hbm [resolvable:$true] %s140
      %143 = dma.vmem_to_hbm [thread:$0]  %s139, 128, %s141, [#allocation10]
    $region33: #{tpu_custom_call.1} parent=1 // pred_fallthru
      _
    // Predicated region
    $region34: #{tpu_custom_call.1} parent=1 // pred_check
      _
    $region35: #{tpu_custom_call.1} parent=1 // pred_check_branch
      %145 = sbr.rel (0) target = $region37
    $region36: #{tpu_custom_call.1} parent=1 // pred_region
      %147 = dma.done [#allocation4], 128
    $region37: #{tpu_custom_call.1} parent=1 // pred_fallthru
      _
    // Predicated region
    $region38: #{tpu_custom_call.1} parent=1 // pred_check
      _
    $region39: #{tpu_custom_call.1} parent=1 // pred_check_branch
      %149 = sbr.rel (0) target = $region41
    $region40: #{tpu_custom_call.1} parent=1 // pred_region
      %151 = dma.done [#allocation10], 128
    $region41: #{tpu_custom_call.1} parent=1 // pred_fallthru
      _
    %152 = vsyncpa [#allocation3], 1
    %153 = vsyncpa [#allocation6], 1
    %154 = vsyncpa [#allocation4], 1
    %155 = vsyncpa [#allocation10], 1

</llo_original>
